<compile_context>
chip_gen: v5e
topology: v5e:2x2
jax: 0.10.0
libtpu: 0.0.40
codegen_flags: <defaults>
</compile_context>

<pallas_src>
import functools
import math

import jax
import jax.numpy as jnp
from jax.experimental import pallas as pl
from jax.experimental.pallas import tpu as pltpu


# Sublane quantum for the second-to-last block dim, by element size.
_SUBLANE = {1: 32, 2: 16, 4: 8, 8: 8}

# Measured roofline knee: >=4-8 MiB per streamed block saturates HBM BW;
# bigger only costs compile time / tail-block waste.
_TARGET_BLOCK_BYTES = 8 * 1024 * 1024
_RESERVE_BYTES = 4 * 1024 * 1024  # alpha/beta residents, per-row columns, misc


def _vmem_limit_bytes():
    """Generation-aware scoped-VMEM limit (v5e/v6e: 128 MiB phys, v7x: 64 MiB)."""
    try:
        phys = int(pltpu.get_tpu_info().vmem_capacity_bytes)
    except Exception:
        phys = 64 * 1024 * 1024  # conservative fallback (v7x-sized)
    return min((phys * 3) // 4, 96 * 1024 * 1024)


def _native_elementwise_ok(dtype):
    """bf16-native VPU elementwise is a win on v6e/v7x; v5e/older lack bf16 VALU."""
    if dtype == jnp.dtype(jnp.float32):
        return True
    if dtype != jnp.dtype(jnp.bfloat16):
        return False
    try:
        kind = jax.devices()[0].device_kind.lower()
    except Exception:
        return False
    return not any(v in kind for v in ("v2", "v3", "v4", "v5"))


def _plan_tile_rows(rows, d_model, io_itemsize, block_rows=None):
    """Pick tile rows: byte-budget driven, rounded to the sublane quantum."""
    sublane = _SUBLANE.get(io_itemsize, 8)
    if block_rows is not None:
        tile = max(sublane, (int(block_rows) // sublane) * sublane)
        return rows if rows <= tile else tile

    budget = max(_vmem_limit_bytes() - _RESERVE_BYTES, 4 * 1024 * 1024)
    # Per tile row: 2x double-buffered input + 2x output blocks (I/O dtype)
    # plus ~3 full-tile f32 compute intermediates (conservative estimate so
    # growing tiles never trips a VMEM cliff / compiler spills).
    per_row = d_model * (4 * io_itemsize + 3 * 4)
    budget_rows = max(budget // per_row, sublane)
    target_rows = max(_TARGET_BLOCK_BYTES // (d_model * io_itemsize), sublane)
    tile = min(budget_rows, target_rows)
    tile = max(sublane, (tile // sublane) * sublane)
    return rows if rows <= tile else tile


def _layernorm_kernel(x_ref, alpha_ref, beta_ref, o_ref, *, eps, d_model, upcast):
    # Matches the reference module exactly: torch.std defaults to the UNBIASED
    # estimator (ddof=1) and eps is added to the *std*. Requires d_model >= 2
    # (d_model == 1 divides by zero, same as the PyTorch reference).
    x = x_ref[...]
    xe = x.astype(jnp.float32) if upcast else x  # elementwise compute dtype

    n = jnp.float32(d_model)
    # Single fused pass over the tile: sum and sum-of-squares with f32
    # accumulation. No full-tile `diff` is materialized; (x - mean) is
    # recomputed inline in the output expression below.
    sx = jnp.sum(xe, axis=-1, keepdims=True, dtype=jnp.float32)
    sxx = jnp.sum(xe * xe, axis=-1, keepdims=True, dtype=jnp.float32)
    mean = sx * (1.0 / n)
    var = (sxx - n * mean * mean) * (1.0 / (n - 1.0))
    var = jnp.maximum(var, 0.0)  # guard tiny negatives from cancellation
    inv = pl.reciprocal(jnp.sqrt(var) + jnp.float32(eps), approx=False)

    # Only the (tile_rows, 1) per-row columns are cast; the full-tile
    # normalize + affine runs in the elementwise dtype (bf16-native on
    # v6e/v7x, f32 on v5e). alpha/beta were pre-cast once in the wrapper.
    mean_c = mean.astype(xe.dtype)
    inv_c = inv.astype(xe.dtype)
    o_ref[...] = (alpha_ref[...] * ((xe - mean_c) * inv_c)
                  + beta_ref[...]).astype(o_ref.dtype)


def layer_norm(x, alpha, beta, eps=1e-6, *, block_rows=None):
    """LayerNorm matching the PyTorch reference (std with ddof=1, eps on std)."""
    orig_shape = x.shape
    d_model = orig_shape[-1]
    rows = math.prod(orig_shape[:-1]) if len(orig_shape) > 1 else 1

    x2d = x.reshape(rows, d_model)
    io_itemsize = jnp.dtype(x.dtype).itemsize

    upcast = not _native_elementwise_ok(jnp.dtype(x.dtype))
    compute_dtype = jnp.float32 if upcast else x.dtype
    # Pre-cast once in the wrapper; resident in VMEM across the whole grid.
    alpha2d = alpha.reshape(1, d_model).astype(compute_dtype)
    beta2d = beta.reshape(1, d_model).astype(compute_dtype)

    tile_r = _plan_tile_rows(rows, d_model, io_itemsize, block_rows)
    grid = (pl.cdiv(rows, tile_r),)
    vmem_limit = _vmem_limit_bytes()

    kernel = functools.partial(
        _layernorm_kernel, eps=eps, d_model=d_model, upcast=upcast)

    # NOTE: for d_model < 128 the last-dim block equals the full array dim
    # (legal) but lane utilization / output stores are partial; real
    # transformer widths (multiples of 128) are lane-dense.
    out2d = pl.pallas_call(
        kernel,
        out_shape=jax.ShapeDtypeStruct((rows, d_model), x.dtype),
        grid_spec=pltpu.PrefetchScalarGridSpec(
            num_scalar_prefetch=0,
            grid=grid,
            in_specs=[
                # Row-tiled input: streamed + double-buffered by Pallas.
                pl.BlockSpec((tile_r, d_model), lambda i: (i, 0)),
                # alpha/beta: same block every step -> stay resident in VMEM.
                pl.BlockSpec((1, d_model), lambda i: (0, 0)),
                pl.BlockSpec((1, d_model), lambda i: (0, 0)),
            ],
            out_specs=pl.BlockSpec((tile_r, d_model), lambda i: (i, 0)),
        ),
        compiler_params=pltpu.CompilerParams(
            # Rows are independent -> let megacore chips shard the row loop.
            dimension_semantics=("parallel",),
            vmem_limit_bytes=vmem_limit,
        ),
    )(x2d, alpha2d, beta2d)

    return out2d.reshape(orig_shape)


def _reference(x, alpha, beta, eps):
    d_model = x.shape[-1]
    mean = jnp.mean(x, axis=-1, keepdims=True)
    std = jnp.sqrt(
        jnp.sum((x - mean) ** 2, axis=-1, keepdims=True) / (d_model - 1))
    return alpha * ((x - mean) / (std + eps)) + beta


if __name__ == "__main__":
    key = jax.random.PRNGKey(0)

    # Small shape consistent with the module's forward: (batch, seq, d_model).
    batch, seq, d_model = 2, 8, 32
    x = jax.random.normal(key, (batch, seq, d_model), dtype=jnp.float32)
    alpha = jnp.ones((d_model,), dtype=jnp.float32)   # module __init__
    beta = jnp.zeros((d_model,), dtype=jnp.float32)

    out = jax.block_until_ready(layer_norm(x, alpha, beta, eps=1e-6))
    ref = _reference(x, alpha, beta, 1e-6)
    assert jnp.allclose(out, ref, atol=1e-5, rtol=1e-5), "mismatch vs reference"

    # Multi-tile grid + partial tail block (block_rows forces small tiles),
    # with a non-trivial affine.
    x2 = jax.random.normal(jax.random.PRNGKey(1), (4, 300, 256), jnp.float32)
    alpha2 = jnp.full((256,), 0.5, jnp.float32)
    beta2 = jnp.full((256,), -0.25, jnp.float32)
    out2 = jax.block_until_ready(
        layer_norm(x2, alpha2, beta2, eps=1e-6, block_rows=256))
    ref2 = _reference(x2, alpha2, beta2, 1e-6)
    assert jnp.allclose(out2, ref2, atol=2e-5, rtol=2e-5), "mismatch (tiled case)"

    # bf16 activations: exercises the bf16-native elementwise path on v6e/v7x
    # (falls back to the f32-upcast path on v5e and older).
    x3 = jax.random.normal(jax.random.PRNGKey(2), (8, 128, 512), jnp.bfloat16)
    alpha3 = jnp.ones((512,), jnp.float32)
    beta3 = jnp.zeros((512,), jnp.float32)
    out3 = jax.block_until_ready(layer_norm(x3, alpha3, beta3, eps=1e-6))
    ref3 = _reference(x3.astype(jnp.float32), alpha3, beta3, 1e-6)
    assert jnp.allclose(out3.astype(jnp.float32), ref3, atol=5e-2, rtol=5e-2), \
        "mismatch (bf16 case)"

    print("KERNEL_OK")
</pallas_src>

<mosaic_0001>
module attributes {stable_mosaic.version = 11 : i64} {
  func.func @_layernorm_kernel(%arg0: i32, %arg1: memref<16x32xf32, #tpu.memory_space<vmem>>, %arg2: memref<1x32xf32, #tpu.memory_space<vmem>>, %arg3: memref<1x32xf32, #tpu.memory_space<vmem>>, %arg4: memref<16x32xf32, #tpu.memory_space<vmem>>) attributes {dimension_semantics = [#tpu.dimension_semantics<parallel>], iteration_bounds = array<i64: 1>, scalar_prefetch = 0 : i64, scratch_operands = 0 : i64, tpu.core_type = #tpu.core_type<tc>, window_params = [{transform_indices = @transform_0, window_bounds = array<i64: 16, 32>}, {pipeline_mode = #tpu.pipeline_mode<synchronous>, transform_indices = @transform_1, window_bounds = array<i64: 1, 32>}, {pipeline_mode = #tpu.pipeline_mode<synchronous>, transform_indices = @transform_2, window_bounds = array<i64: 1, 32>}, {transform_indices = @transform_3, window_bounds = array<i64: 16, 32>}]} {
    %c0 = arith.constant 0 : index
    %c0_0 = arith.constant 0 : index
    %0 = vector.load %arg1[%c0, %c0_0] : memref<16x32xf32, #tpu.memory_space<vmem>>, vector<16x32xf32>
    %cst = arith.constant dense<0.000000e+00> : vector<16xf32>
    %1 = vector.multi_reduction <add>, %0, %cst [1] : vector<16x32xf32> to vector<16xf32>
    %2 = vector.shape_cast %1 : vector<16xf32> to vector<16x1xf32>
    %3 = arith.mulf %0, %0 : vector<16x32xf32>
    %cst_1 = arith.constant dense<0.000000e+00> : vector<16xf32>
    %4 = vector.multi_reduction <add>, %3, %cst_1 [1] : vector<16x32xf32> to vector<16xf32>
    %5 = vector.shape_cast %4 : vector<16xf32> to vector<16x1xf32>
    %cst_2 = arith.constant 1.000000e+00 : f32
    %cst_3 = arith.constant 3.200000e+01 : f32
    %6 = arith.divf %cst_2, %cst_3 : f32
    %7 = vector.broadcast %6 : f32 to vector<16x1xf32>
    %8 = arith.mulf %2, %7 : vector<16x1xf32>
    %cst_4 = arith.constant 3.200000e+01 : f32
    %9 = vector.broadcast %cst_4 : f32 to vector<16x1xf32>
    %10 = arith.mulf %9, %8 : vector<16x1xf32>
    %11 = arith.mulf %10, %8 : vector<16x1xf32>
    %12 = arith.subf %5, %11 : vector<16x1xf32>
    %cst_5 = arith.constant 3.200000e+01 : f32
    %cst_6 = arith.constant 1.000000e+00 : f32
    %13 = arith.subf %cst_5, %cst_6 : f32
    %cst_7 = arith.constant 1.000000e+00 : f32
    %14 = arith.divf %cst_7, %13 : f32
    %15 = vector.broadcast %14 : f32 to vector<16x1xf32>
    %16 = arith.mulf %12, %15 : vector<16x1xf32>
    %cst_8 = arith.constant 0.000000e+00 : f32
    %17 = vector.broadcast %cst_8 : f32 to vector<16x1xf32>
    %18 = arith.maximumf %16, %17 : vector<16x1xf32>
    %19 = math.sqrt %18 : vector<16x1xf32>
    %cst_9 = arith.constant 9.99999997E-7 : f32
    %20 = vector.broadcast %cst_9 : f32 to vector<16x1xf32>
    %21 = arith.addf %19, %20 : vector<16x1xf32>
    %22 = tpu.reciprocal %21 : vector<16x1xf32> -> vector<16x1xf32>
    %c0_10 = arith.constant 0 : index
    %c0_11 = arith.constant 0 : index
    %23 = vector.load %arg2[%c0_10, %c0_11] : memref<1x32xf32, #tpu.memory_space<vmem>>, vector<1x32xf32>
    %24 = vector.broadcast %8 : vector<16x1xf32> to vector<16x32xf32>
    %25 = arith.subf %0, %24 : vector<16x32xf32>
    %26 = vector.broadcast %22 : vector<16x1xf32> to vector<16x32xf32>
    %27 = arith.mulf %25, %26 : vector<16x32xf32>
    %28 = vector.broadcast %23 : vector<1x32xf32> to vector<16x32xf32>
    %29 = arith.mulf %28, %27 : vector<16x32xf32>
    %c0_12 = arith.constant 0 : index
    %c0_13 = arith.constant 0 : index
    %30 = vector.load %arg3[%c0_12, %c0_13] : memref<1x32xf32, #tpu.memory_space<vmem>>, vector<1x32xf32>
    %31 = vector.broadcast %30 : vector<1x32xf32> to vector<16x32xf32>
    %32 = arith.addf %29, %31 : vector<16x32xf32>
    %c0_14 = arith.constant 0 : index
    %c0_15 = arith.constant 0 : index
    %33 = vector.load %arg4[%c0_14, %c0_15] : memref<16x32xf32, #tpu.memory_space<vmem>>, vector<16x32xf32>
    tpu.vector_store %arg4[%c0_14, %c0_15], %32 {strides = array<i32>} : memref<16x32xf32, #tpu.memory_space<vmem>>, vector<16x32xf32>,
    return
  }
  func.func @transform_0(%arg0: i32) -> (i32, i32) {
    %c0_i32 = arith.constant 0 : i32
    %c0_i32_0 = arith.constant 0 : i32
    return %arg0, %c0_i32 : i32, i32
  }
  func.func @transform_1(%arg0: i32) -> (i32, i32) {
    %c0_i32 = arith.constant 0 : i32
    %c0_i32_0 = arith.constant 0 : i32
    %c0_i32_1 = arith.constant 0 : i32
    return %c0_i32, %c0_i32_0 : i32, i32
  }
  func.func @transform_2(%arg0: i32) -> (i32, i32) {
    %c0_i32 = arith.constant 0 : i32
    %c0_i32_0 = arith.constant 0 : i32
    %c0_i32_1 = arith.constant 0 : i32
    return %c0_i32, %c0_i32_0 : i32, i32
  }
  func.func @transform_3(%arg0: i32) -> (i32, i32) {
    %c0_i32 = arith.constant 0 : i32
    %c0_i32_0 = arith.constant 0 : i32
    return %arg0, %c0_i32 : i32, i32
  }
}

</mosaic_0001>

<llo_original>
// kernel: tpu_custom_call.1
$region0: #{tpu_custom_call.1}
  #allocation0 [shape = 'u32[]', space=smem, size = 0x4, offset = 0x4, fixed_abs, tag = 'smem constant byte address 0x4 - core index']
  #allocation1 [shape = 'u32[72,128]{1,0:T(1,128)}', space=vmem, size = 0x9000, scoped, tag = 'internal scratch']
  %s0 = inlined_call_operand.hbm [shape: f32[16,32], index: 0, kind: input, shape index: {}]
  %s1 = inlined_call_operand.hbm [shape: f32[1,32], index: 1, kind: input, shape index: {}]
  %s2 = inlined_call_operand.vmem [shape: f32[1,32], index: 2, kind: input, shape index: {}]
  %s3 = inlined_call_operand.hbm [shape: f32[16,32], index: 3, kind: output, shape index: {}]
  %s4 = sld [smem:[#allocation0]]
  $region30: #{tpu_custom_call.1} parent=0
    _
  %s6 = ssub.s32 1, %s4
  %s7 = scalar_select 0, %s6, %s4
  $region1: #{tpu_custom_call.1} parent=0
    #allocation2 [shape = 'u8[8192]{0}', space=vmem, size = 0x2000, scoped, tag = 'input window, operand 0, single buffered']
    #allocation3 [shape = 's32[1]{0}', space=sflag, size = 0x4, scoped, tag = 'scoped memory for tpu_custom_call.1']
    #allocation4 [shape = 's32[1]{0}', space=sflag, size = 0x4, scoped, tag = 'scoped memory for tpu_custom_call.1']
    #allocation5 [shape = 'u8[512]{0}', space=vmem, size = 0x400, scoped, tag = 'input window, operand 1, single buffered']
    #allocation6 [shape = 's32[1]{0}', space=sflag, size = 0x4, scoped, tag = 'scoped memory for tpu_custom_call.1']
    #allocation7 [shape = 'u8[8192]{0}', space=vmem, size = 0x2000, scoped, tag = 'output window, operand 0, single buffered']
    %8 = vsyncpa [#allocation3], 0
    %9 = vsyncpa [#allocation6], 0
    %10 = vsyncpa [#allocation4], 0
    // Predicated region
    $region2: #{tpu_custom_call.1} parent=1 // pred_check
      _
    $region3: #{tpu_custom_call.1} parent=1 // pred_check_branch
      %12 = sbr.rel (0) target = $region5
    $region4: #{tpu_custom_call.1} parent=1 // pred_region
      %14 = vsyncadd [#allocation3], 0
      %s15 = sshll.u32 %s0, 4
      %s16 = int_to_ptr.hbm [resolvable:$true] %s15
      %s17 = sshll.u32 [#allocation2], 4
      %s18 = int_to_ptr.vmem [resolvable:$true] %s17
      %23 = dma.hbm_to_vmem [thread:$0]  %s16, 256, %s18, [#allocation3], 128, 128, 8
    $region5: #{tpu_custom_call.1} parent=1 // pred_fallthru
      _
    // Predicated region
    $region6: #{tpu_custom_call.1} parent=1 // pred_check
      _
    $region7: #{tpu_custom_call.1} parent=1 // pred_check_branch
      %25 = sbr.rel (0) target = $region9
    $region8: #{tpu_custom_call.1} parent=1 // pred_region
      %27 = vsyncadd [#allocation6], 0
      %s29 = sshll.u32 %s1, 4
      %s30 = int_to_ptr.hbm [resolvable:$true] %s29
      %s31 = sshll.u32 [#allocation5], 4
      %s32 = int_to_ptr.vmem [resolvable:$true] %s31
      %34 = dma.hbm_to_vmem [thread:$0]  %s30, 16, %s32, [#allocation6]
    $region9: #{tpu_custom_call.1} parent=1 // pred_fallthru
      _
    // Predicated region
    $region10: #{tpu_custom_call.1} parent=1 // pred_check
      _
    $region11: #{tpu_custom_call.1} parent=1 // pred_check_branch
      %36 = sbr.rel (0) target = $region13
    $region12: #{tpu_custom_call.1} parent=1 // pred_region
      _
    $region13: #{tpu_custom_call.1} parent=1 // pred_fallthru
      _
    // Predicated region
    $region14: #{tpu_custom_call.1} parent=1 // pred_check
      _
    $region15: #{tpu_custom_call.1} parent=1 // pred_check_branch
      %38 = sbr.rel (0) target = $region17
    $region16: #{tpu_custom_call.1} parent=1 // pred_region
      %40 = dma.done [#allocation3], 256
    $region17: #{tpu_custom_call.1} parent=1 // pred_fallthru
      _
    // Predicated region
    $region18: #{tpu_custom_call.1} parent=1 // pred_check
      _
    $region19: #{tpu_custom_call.1} parent=1 // pred_check_branch
      %42 = sbr.rel (0) target = $region21
    $region20: #{tpu_custom_call.1} parent=1 // pred_region
      %44 = dma.done [#allocation6], 16
    $region21: #{tpu_custom_call.1} parent=1 // pred_fallthru
      _
    %v45 = vld [vmem:[#allocation2] sm:$0xff]
    %v46 = vld [vmem:[#allocation2 + $0x8] sm:$0xff]
    %vm47 = vcmask 261120
    %v48 = vsel %vm47, %v45, 0.0
    %49 = vadd.xlane.f32.xlu0 %v48
    %v50 = vpop.xlane.xlu0 %49
    %v51 = vsel %vm47, %v46, 0.0
    %52 = vadd.xlane.f32.xlu0 %v51
    %v53 = vpop.xlane.xlu0 %52
    %v54 = vmul.f32 %v45, %v45
    %v55 = vmul.f32 %v46, %v46
    %v56 = vsel %vm47, %v54, 0.0
    %57 = vadd.xlane.f32.xlu0 %v56
    %v58 = vpop.xlane.xlu0 %57
    %v59 = vsel %vm47, %v55, 0.0
    %60 = vadd.xlane.f32.xlu0 %v59
    %v61 = vpop.xlane.xlu0 %60
    %v62 = vmul.f32 %v50, 0.03125
    %v63 = vmul.f32 %v53, 0.03125
    %v64 = vmul.f32 %v62, 32.0
    %v65 = vmul.f32 %v63, 32.0
    %v66 = vmul.f32 %v64, %v62
    %v67 = vmul.f32 %v65, %v63
    %v68 = vsub.f32 %v58, %v66
    %v69 = vsub.f32 %v61, %v67
    %v70 = vmul.f32 %v68, 0.032258064
    %v71 = vmul.f32 %v69, 0.032258064
    %v72 = vmax.f32 %v70, 0.0
    %v73 = vmax.f32 %v71, 0.0
    %v74 = vrsqrt.pop %v72
    %v75 = vmul.f32 %v74, %v72
    %v76 = vmul.f32 %v75, %v74
    %v77 = vmul.f32 0.5, %v76
    %v78 = vsub.f32 1.5, %v77
    %v79 = vmul.f32 %v74, %v78
    %v80 = vmul.f32 %v72, %v79
    %vm81 = vcmp.eq.f32.partialorder %v72, inf
    %v82 = vsel %vm81, %v72, %v80
    %vm83 = vcmp.eq.f32.partialorder %v72, 0.0
    %v84 = vand.u32 %v72, 2147483648
    %v85 = vsel %vm83, %v84, %v82
    %v86 = vrsqrt.pop %v73
    %v87 = vmul.f32 %v86, %v73
    %v88 = vmul.f32 %v87, %v86
    %v89 = vmul.f32 0.5, %v88
    %v90 = vsub.f32 1.5, %v89
    %v91 = vmul.f32 %v86, %v90
    %v92 = vmul.f32 %v73, %v91
    %vm93 = vcmp.eq.f32.partialorder %v73, inf
    %v94 = vsel %vm93, %v73, %v92
    %vm95 = vcmp.eq.f32.partialorder %v73, 0.0
    %v96 = vand.u32 %v73, 2147483648
    %v97 = vsel %vm95, %v96, %v94
    %v98 = vadd.f32 %v85, 1e-06
    %v99 = vadd.f32 %v97, 1e-06
    %v100 = vrcp.pop %v98
    %v101 = vmul.f32 %v98, %v100
    %v102 = vsub.f32 1.0, %v101
    %v103 = vmul.f32 %v100, %v102
    %v104 = vadd.f32 %v100, %v103
    %vm105 = vweird.f32 %v98
    %vm106 = vweird.f32 %v100
    %vm107 = vmor %vm105, %vm106
    %v108 = vsel %vm107, %v100, %v104
    %v109 = vand.u32 2147483647, %v98
    %vm110 = vcmp.eq.f32.partialorder %v109, 8.507059e+37
    %v111 = vand.u32 %v98, 2147483648
    %v112 = vor.u32 1.1754944e-38, %v111
    %v113 = vsel %vm110, %v112, %v108
    %v114 = vrcp.pop %v99
    %v115 = vmul.f32 %v99, %v114
    %v116 = vsub.f32 1.0, %v115
    %v117 = vmul.f32 %v114, %v116
    %v118 = vadd.f32 %v114, %v117
    %vm119 = vweird.f32 %v99
    %vm120 = vweird.f32 %v114
    %vm121 = vmor %vm119, %vm120
    %v122 = vsel %vm121, %v114, %v118
    %v123 = vand.u32 2147483647, %v99
    %vm124 = vcmp.eq.f32.partialorder %v123, 8.507059e+37
    %v125 = vand.u32 %v99, 2147483648
    %v126 = vor.u32 1.1754944e-38, %v125
    %v127 = vsel %vm124, %v126, %v122
    %v128 = vld [vmem:[#allocation5] sm:$0x1]
    %v129 = vsub.f32 %v45, %v62
    %v130 = vsub.f32 %v46, %v63
    %v131 = vmul.f32 %v129, %v113
    %v132 = vmul.f32 %v130, %v127
    %v134 = vperm.slane %v128, 0
    %v136 = vmul.f32 %v134, %v131
    %v137 = vmul.f32 %v134, %v132
    %v138 = vld [vmem:[%s2] sm:$0x1]
    %v140 = vperm.slane %v138, 0
    %v142 = vadd.f32 %v136, %v140
    %v143 = vadd.f32 %v137, %v140
    %144 = vst.msk [vmem:[#allocation7] sm:$0xff] %vm47, %v142
    %145 = vst.msk [vmem:[#allocation7 + $0x8] sm:$0xff] %vm47, %v143
    // Predicated region
    $region22: #{tpu_custom_call.1} parent=1 // pred_check
      _
    $region23: #{tpu_custom_call.1} parent=1 // pred_check_branch
      %147 = sbr.rel (0) target = $region25
    $region24: #{tpu_custom_call.1} parent=1 // pred_region
      %149 = vsyncadd [#allocation4], 0
      %s150 = sshll.u32 [#allocation7], 4
      %s151 = int_to_ptr.vmem [resolvable:$true] %s150
      %s152 = sshll.u32 %s3, 4
      %s153 = int_to_ptr.hbm [resolvable:$true] %s152
      %158 = dma.vmem_to_hbm [thread:$0]  %s151, 256, %s153, [#allocation4], 128, 128, 8
    $region25: #{tpu_custom_call.1} parent=1 // pred_fallthru
      _
    // Predicated region
    $region26: #{tpu_custom_call.1} parent=1 // pred_check
      _
    $region27: #{tpu_custom_call.1} parent=1 // pred_check_branch
      %160 = sbr.rel (0) target = $region29
    $region28: #{tpu_custom_call.1} parent=1 // pred_region
      %162 = dma.done [#allocation4], 256
    $region29: #{tpu_custom_call.1} parent=1 // pred_fallthru
      _
    %163 = vsyncpa [#allocation3], 1
    %164 = vsyncpa [#allocation6], 1
    %165 = vsyncpa [#allocation4], 1

</llo_original>
